<compile_context>
chip_gen: v7x
topology: tpu7x:2x2x1
jax: 0.10.0
libtpu: 0.0.40
codegen_flags: <defaults>
</compile_context>

<pallas_src>
import functools

import jax
import jax.numpy as jnp
from jax.experimental import pallas as pl
from jax.experimental.pallas import tpu as pltpu

_TN_MAX = 256        # max rows per block (multiple of 8)
_TC_MAX = 4096       # max classes per block (multiple of 128); 4 MiB f32 tile
_NEG_BIG = -1e30     # "minus infinity" that is safe for f32 vector arithmetic


def _round_up(a, b):
    return (a + b - 1) // b * b


def _round_down(a, b):
    return a // b * b


def _lse_kernel(x_ref, lse_ref, m_ref, l_ref, *, scale, c_rem, has_col_pad):
    """One (TN, TC) tile.  Grid = (N_tiles, C_tiles); C axis is the reduction."""
    k = pl.program_id(1)
    last = pl.num_programs(1) - 1

    @pl.when(k == 0)
    def _():
        m_ref[...] = jnp.full_like(m_ref, _NEG_BIG)
        l_ref[...] = jnp.zeros_like(l_ref)

    logits = x_ref[...].astype(jnp.float32) * scale        # (TN, TC)

    def accum(lg):
        # Online (flash-style) log-sum-exp update over the class axis.
        m_prev = m_ref[...]
        m_new = jnp.maximum(m_prev, jnp.max(lg, axis=-1, keepdims=True))
        alpha = jnp.exp(m_prev - m_new)
        l_ref[...] = alpha * l_ref[...] + jnp.sum(jnp.exp(lg - m_new),
                                                  axis=-1, keepdims=True)
        m_ref[...] = m_new

    if has_col_pad:
        # Only the final class tile is ragged; interior tiles skip the mask.
        @pl.when(k != last)
        def _():
            accum(logits)

        @pl.when(k == last)
        def _():
            col = jax.lax.broadcasted_iota(jnp.int32, logits.shape, 1)
            accum(jnp.where(col < c_rem, logits, _NEG_BIG))
    else:
        accum(logits)

    @pl.when(k == last)
    def _():
        lse_ref[...] = m_ref[...] + jnp.log(l_ref[...])


def amsoftmax_loss(x, target, scale=20.0, margin=0.0, *,
                   block_n=None, block_c=None):
    """x: (N, C) cosine logits (f32/bf16), target: (N,) int ids -> f32 loss."""
    # The reference module subtracts `margin` from EVERY class; a constant
    # per-row shift cancels exactly under log_softmax, so the loss does not
    # depend on it and the in-kernel subtraction is skipped.  (If margin were
    # target-class-only, the fix would be `picked - scale*margin` below.)
    del margin

    n, c = x.shape

    if block_n is not None:
        tn = block_n
    else:
        tn = n if n < 8 else min(_TN_MAX, _round_down(n, 8))
        # Prefer >= 2 row blocks so the "parallel" batch axis can shard across
        # the two TensorCores of a v7x megacore.
        if n > 8 and pl.cdiv(n, tn) < 2:
            tn = max(8, _round_up(pl.cdiv(n, 2), 8))

    if block_c is not None:
        tc = block_c
    else:
        tc = c if c < 128 else min(_TC_MAX, _round_down(c, 128))

    grid = (pl.cdiv(n, tn), pl.cdiv(c, tc))
    has_col_pad = (c % tc) != 0
    c_rem = c - (grid[1] - 1) * tc        # valid columns in the last C tile

    kernel = functools.partial(_lse_kernel, scale=float(scale),
                               c_rem=int(c_rem),
                               has_col_pad=bool(has_col_pad))

    # Cover 2 double-buffered input tiles + scratch, with headroom; stays
    # within the 64 MiB physical VMEM of a v7x TensorCore.
    itemsize = jnp.dtype(x.dtype).itemsize
    vmem_limit = int(min(max(2 * tn * tc * itemsize + (4 << 20), 32 << 20),
                         48 << 20))

    lse = pl.pallas_call(
        kernel,
        out_shape=jax.ShapeDtypeStruct((n, 1), jnp.float32),
        grid_spec=pltpu.PrefetchScalarGridSpec(
            num_scalar_prefetch=0,
            grid=grid,
            in_specs=[pl.BlockSpec((tn, tc), lambda i, k: (i, k))],
            out_specs=pl.BlockSpec((tn, 1), lambda i, k: (i, 0)),
            scratch_shapes=[
                pltpu.VMEM((tn, 1), jnp.float32),   # running max m
                pltpu.VMEM((tn, 1), jnp.float32),   # running sum l
            ],
        ),
        compiler_params=pltpu.CompilerParams(
            dimension_semantics=("parallel", "arbitrary"),
            vmem_limit_bytes=vmem_limit,
        ),
    )(x)

    # Target-class logit: an N-element gather in XLA (negligible HBM) instead
    # of an in-kernel compare + select + third XLU reduction on every tile.
    tgt = target.reshape(-1, 1).astype(jnp.int32)
    picked = jnp.take_along_axis(x, tgt, axis=1).astype(jnp.float32) * float(scale)
    return jnp.mean(lse - picked)


def _reference(x, target, scale=20.0, margin=0.0):
    logits = (x.astype(jnp.float32) - margin) * scale
    logp = jax.nn.log_softmax(logits, axis=1)
    picked = jnp.take_along_axis(logp, target.reshape(-1, 1).astype(jnp.int32),
                                 axis=1)
    return jnp.mean(-picked)


if __name__ == "__main__":
    key = jax.random.PRNGKey(0)
    kx, kt = jax.random.split(key)

    # Test 1: small single-tile case (batch x classes).
    N, C = 8, 32
    x = jnp.tanh(jax.random.normal(kx, (N, C), dtype=jnp.float32))
    target = jax.random.randint(kt, (N,), 0, C, dtype=jnp.int32)
    loss = jax.block_until_ready(amsoftmax_loss(x, target, scale=20.0, margin=0.0))
    ref = jax.block_until_ready(_reference(x, target, scale=20.0, margin=0.0))
    assert jnp.allclose(loss, ref, atol=1e-5, rtol=1e-5), (loss, ref)

    # Test 2: multi-tile grid, ragged on both axes (online LSE across C tiles,
    # last-tile-only column mask, masked ragged-row writeback, parallel N axis).
    kx2, kt2 = jax.random.split(jax.random.PRNGKey(1))
    N2, C2 = 20, 300
    x2 = jnp.tanh(jax.random.normal(kx2, (N2, C2), dtype=jnp.float32))
    t2 = jax.random.randint(kt2, (N2,), 0, C2, dtype=jnp.int32)
    loss2 = jax.block_until_ready(
        amsoftmax_loss(x2, t2, scale=20.0, margin=0.0, block_n=8, block_c=128))
    ref2 = jax.block_until_ready(_reference(x2, t2, scale=20.0, margin=0.0))
    assert jnp.allclose(loss2, ref2, atol=1e-5, rtol=1e-5), (loss2, ref2)

    # Test 3: default block selection on ragged shapes + bf16 HBM input path.
    x3 = x2.astype(jnp.bfloat16)
    loss3 = jax.block_until_ready(amsoftmax_loss(x3, t2, scale=20.0, margin=0.0))
    ref3 = jax.block_until_ready(_reference(x3, t2, scale=20.0, margin=0.0))
    assert jnp.allclose(loss3, ref3, atol=1e-3, rtol=1e-3), (loss3, ref3)

    print("KERNEL_OK")
</pallas_src>

<mosaic_0001>
module attributes {stable_mosaic.version = 11 : i64} {
  func.func @_lse_kernel(%arg0: i32, %arg1: i32, %arg2: memref<8x32xf32, #tpu.memory_space<vmem>>, %arg3: memref<8x1xf32, #tpu.memory_space<vmem>>, %arg4: memref<8x1xf32, #tpu.memory_space<vmem>>, %arg5: memref<8x1xf32, #tpu.memory_space<vmem>>) attributes {dimension_semantics = [#tpu.dimension_semantics<parallel>, #tpu.dimension_semantics<arbitrary>], iteration_bounds = array<i64: 1, 1>, scalar_prefetch = 0 : i64, scratch_operands = 2 : i64, tpu.core_type = #tpu.core_type<tc>, window_params = [{transform_indices = @transform_0, window_bounds = array<i64: 8, 32>}, {transform_indices = @transform_1, window_bounds = array<i64: 8, 1>}]} {
    %c0_i32 = arith.constant 0 : i32
    %0 = arith.cmpi eq, %arg1, %c0_i32 : i32
    %1 = arith.extui %0 : i1 to i32
    %c0_i32_0 = arith.constant 0 : i32
    %2 = arith.cmpi ne, %1, %c0_i32_0 : i32
    scf.if %2 {
      %cst_14 = arith.constant -1.000000e+30 : f32
      %25 = vector.broadcast %cst_14 : f32 to vector<8x1xf32>
      %c0_15 = arith.constant 0 : index
      %c0_16 = arith.constant 0 : index
      %26 = vector.load %arg4[%c0_15, %c0_16] : memref<8x1xf32, #tpu.memory_space<vmem>>, vector<8x1xf32>
      tpu.vector_store %arg4[%c0_15, %c0_16], %25 {strides = array<i32>} : memref<8x1xf32, #tpu.memory_space<vmem>>, vector<8x1xf32>,
      %cst_17 = arith.constant 0.000000e+00 : f32
      %27 = vector.broadcast %cst_17 : f32 to vector<8x1xf32>
      %c0_18 = arith.constant 0 : index
      %c0_19 = arith.constant 0 : index
      %28 = vector.load %arg5[%c0_18, %c0_19] : memref<8x1xf32, #tpu.memory_space<vmem>>, vector<8x1xf32>
      tpu.vector_store %arg5[%c0_18, %c0_19], %27 {strides = array<i32>} : memref<8x1xf32, #tpu.memory_space<vmem>>, vector<8x1xf32>,
    } else {
    }
    %c0 = arith.constant 0 : index
    %c0_1 = arith.constant 0 : index
    %3 = vector.load %arg2[%c0, %c0_1] : memref<8x32xf32, #tpu.memory_space<vmem>>, vector<8x32xf32>
    %cst = arith.constant 2.000000e+01 : f32
    %4 = vector.broadcast %cst : f32 to vector<8x32xf32>
    %5 = arith.mulf %3, %4 : vector<8x32xf32>
    %c0_2 = arith.constant 0 : index
    %c0_3 = arith.constant 0 : index
    %6 = vector.load %arg4[%c0_2, %c0_3] : memref<8x1xf32, #tpu.memory_space<vmem>>, vector<8x1xf32>
    %cst_4 = arith.constant dense<0xFF800000> : vector<8xf32>
    %7 = vector.multi_reduction <maximumf>, %5, %cst_4 [1] : vector<8x32xf32> to vector<8xf32>
    %8 = vector.shape_cast %7 : vector<8xf32> to vector<8x1xf32>
    %9 = arith.maximumf %6, %8 : vector<8x1xf32>
    %10 = arith.subf %6, %9 : vector<8x1xf32>
    %11 = math.exp %10 : vector<8x1xf32>
    %c0_5 = arith.constant 0 : index
    %c0_6 = arith.constant 0 : index
    %12 = vector.load %arg5[%c0_5, %c0_6] : memref<8x1xf32, #tpu.memory_space<vmem>>, vector<8x1xf32>
    %13 = arith.mulf %11, %12 : vector<8x1xf32>
    %14 = vector.broadcast %9 : vector<8x1xf32> to vector<8x32xf32>
    %15 = arith.subf %5, %14 : vector<8x32xf32>
    %16 = math.exp %15 : vector<8x32xf32>
    %cst_7 = arith.constant dense<0.000000e+00> : vector<8xf32>
    %17 = vector.multi_reduction <add>, %16, %cst_7 [1] : vector<8x32xf32> to vector<8xf32>
    %18 = vector.shape_cast %17 : vector<8xf32> to vector<8x1xf32>
    %19 = arith.addf %13, %18 : vector<8x1xf32>
    %c0_8 = arith.constant 0 : index
    %c0_9 = arith.constant 0 : index
    %20 = vector.load %arg5[%c0_8, %c0_9] : memref<8x1xf32, #tpu.memory_space<vmem>>, vector<8x1xf32>
    tpu.vector_store %arg5[%c0_8, %c0_9], %19 {strides = array<i32>} : memref<8x1xf32, #tpu.memory_space<vmem>>, vector<8x1xf32>,
    %c0_10 = arith.constant 0 : index
    %c0_11 = arith.constant 0 : index
    %21 = vector.load %arg4[%c0_10, %c0_11] : memref<8x1xf32, #tpu.memory_space<vmem>>, vector<8x1xf32>
    tpu.vector_store %arg4[%c0_10, %c0_11], %9 {strides = array<i32>} : memref<8x1xf32, #tpu.memory_space<vmem>>, vector<8x1xf32>,
    %c0_i32_12 = arith.constant 0 : i32
    %22 = arith.cmpi eq, %arg1, %c0_i32_12 : i32
    %23 = arith.extui %22 : i1 to i32
    %c0_i32_13 = arith.constant 0 : i32
    %24 = arith.cmpi ne, %23, %c0_i32_13 : i32
    scf.if %24 {
      %c0_14 = arith.constant 0 : index
      %c0_15 = arith.constant 0 : index
      %25 = vector.load %arg4[%c0_14, %c0_15] : memref<8x1xf32, #tpu.memory_space<vmem>>, vector<8x1xf32>
      %c0_16 = arith.constant 0 : index
      %c0_17 = arith.constant 0 : index
      %26 = vector.load %arg5[%c0_16, %c0_17] : memref<8x1xf32, #tpu.memory_space<vmem>>, vector<8x1xf32>
      %27 = math.log %26 : vector<8x1xf32>
      %28 = arith.addf %25, %27 : vector<8x1xf32>
      %c0_18 = arith.constant 0 : index
      %c0_19 = arith.constant 0 : index
      %29 = vector.load %arg3[%c0_18, %c0_19] : memref<8x1xf32, #tpu.memory_space<vmem>>, vector<8x1xf32>
      tpu.vector_store %arg3[%c0_18, %c0_19], %28 {strides = array<i32>} : memref<8x1xf32, #tpu.memory_space<vmem>>, vector<8x1xf32>,
    } else {
    }
    return
  }
  func.func @transform_0(%arg0: i32, %arg1: i32) -> (i32, i32) {
    %c0_i32 = arith.constant 0 : i32
    return %arg0, %arg1 : i32, i32
  }
  func.func @transform_1(%arg0: i32, %arg1: i32) -> (i32, i32) {
    %c0_i32 = arith.constant 0 : i32
    %c0_i32_0 = arith.constant 0 : i32
    return %arg0, %c0_i32 : i32, i32
  }
}

</mosaic_0001>

<llo_original>
// kernel: tpu_custom_call.1
$region0: #{tpu_custom_call.1}
  #allocation0 [shape = 'u32[]', space=smem, size = 0x4, offset = 0x4, fixed_abs, tag = 'smem constant byte address 0x4 - core index']
  #allocation1 [shape = 'u32[144,128]{1,0:T(1,128)}', space=vmem, size = 0x12000, scoped, tag = 'internal scratch']
  #allocation2 [shape = 'f32[8,1]{1,0:T(8,128)}', space=vmem, size = 0x1000, scoped, tag = 'scratch operand']
  #allocation3 [shape = 'f32[8,1]{1,0:T(8,128)}', space=vmem, size = 0x1000, scoped, tag = 'scratch operand']
  %s0 = inlined_call_operand.hbm [shape: f32[8,32], index: 0, kind: input, shape index: {}]
  %s1 = inlined_call_operand.vmem [shape: f32[8,1], index: 1, kind: output, shape index: {}]
  %s2 = sld [smem:[#allocation0]]
  $region26: #{tpu_custom_call.1} parent=0
    _
  %s4 = ssub.s32 1, %s2
  %s5 = scalar_select 0, %s4, %s2
  $region1: #{tpu_custom_call.1} parent=0
    #allocation4 [shape = 'u8[4096]{0}', space=vmem, size = 0x1000, scoped, tag = 'input window, operand 0, single buffered']
    #allocation5 [shape = 's32[1]{0}', space=sflag, size = 0x4, scoped, tag = 'scoped memory for tpu_custom_call.1']
    %6 = vsyncpa [#allocation5], 0
    // Predicated region
    $region2: #{tpu_custom_call.1} parent=1 // pred_check
      _
    $region3: #{tpu_custom_call.1} parent=1 // pred_check_branch
      %8 = sbr.rel (0) target = $region5
    $region4: #{tpu_custom_call.1} parent=1 // pred_region
      %s10 = ssub.s32 128, 128
      %11 = vsyncadd [#allocation5], %s10
      %s13 = sshll.u32 [#allocation4], 4
      %s14 = int_to_ptr.vmem [resolvable:$true] %s13
      %16 = dma.hbm_to_vmem [thread:$0]  %s0, 128, %s14, [#allocation5]
    $region5: #{tpu_custom_call.1} parent=1 // pred_fallthru
      _
    // Predicated region
    $region6: #{tpu_custom_call.1} parent=1 // pred_check
      _
    $region7: #{tpu_custom_call.1} parent=1 // pred_check_branch
      %18 = sbr.rel (0) target = $region9
    $region8: #{tpu_custom_call.1} parent=1 // pred_region
      %19 = dma.done [#allocation5], 128
    $region9: #{tpu_custom_call.1} parent=1 // pred_fallthru
      _
    %p20 = scmp.eq.s32.totalorder 0, 0
    // Predicated region
    $region10: #{tpu_custom_call.1} parent=1 // pred_check
      %p21 = pneg %p20
    $region11: #{tpu_custom_call.1} parent=1 // pred_check_branch
      %23 = sbr.rel (%p21) target = $region13
    $region12: #{tpu_custom_call.1} parent=1 // pred_region
      %vm24 = vcmask 7168
      %25 = vst.msk [vmem:[#allocation2] sm:$0xff] %vm24, -1e+30
      %26 = vst.msk [vmem:[#allocation3] sm:$0xff] %vm24, 0.0
    $region13: #{tpu_custom_call.1} parent=1 // pred_fallthru
      _
    %v27 = vld [vmem:[#allocation4] sm:$0xff]
    %v28 = vmul.f32 %v27, 20.0
    %v29 = vld [vmem:[#allocation2] sm:$0xff]
    %vm30 = vcmask 261120
    %v31 = vsel %vm30, %v28, -inf
    %32 = vmax.xlane.f32.xlu0 %v31
    %v33 = vpop.xlane.xlu0 %32
    %v34 = vmax.f32 %v29, %v33
    %v35 = vsub.f32 %v29, %v34
    %v36 = vmul.f32 %v35, 1.442695
    %v37 = vpow.pop %v36
    %v38 = vld [vmem:[#allocation3] sm:$0xff]
    %v39 = vmul.f32 %v37, %v38
    %41 = vset.pattern.permute.xlu0 0
    %42 = vperm.xlu0 %41, %v34
    %v43 = vpop.permute.xlu0 %42
    %v45 = vsub.f32 %v28, %v43
    %v46 = vmul.f32 %v45, 1.442695
    %v47 = vpow.pop %v46
    %v48 = vsel %vm30, %v47, 0.0
    %49 = vadd.xlane.f32.xlu0 %v48
    %v50 = vpop.xlane.xlu0 %49
    %v51 = vadd.f32 %v39, %v50
    %vm52 = vcmask 7168
    %53 = vst.msk [vmem:[#allocation3] sm:$0xff] %vm52, %v51
    %54 = vst.msk [vmem:[#allocation2] sm:$0xff] %vm52, %v34
    // Predicated region
    $region14: #{tpu_custom_call.1} parent=1 // pred_check
      %p55 = pneg %p20
    $region15: #{tpu_custom_call.1} parent=1 // pred_check_branch
      %57 = sbr.rel (%p55) target = $region17
    $region16: #{tpu_custom_call.1} parent=1 // pred_region
      %v58 = vld [vmem:[#allocation2] sm:$0xff]
      %v59 = vld [vmem:[#allocation3] sm:$0xff]
      %v60 = vlog2.pop %v59
      %v61 = vmul.f32 %v60, 0.6931472
      %v62 = vadd.f32 %v58, %v61
      %63 = vst.msk [vmem:[%s1] sm:$0xff] %vm52, %v62
    $region17: #{tpu_custom_call.1} parent=1 // pred_fallthru
      _
    // Predicated region
    $region18: #{tpu_custom_call.1} parent=1 // pred_check
      _
    $region19: #{tpu_custom_call.1} parent=1 // pred_check_branch
      %65 = sbr.rel (0) target = $region21
    $region20: #{tpu_custom_call.1} parent=1 // pred_region
      _
    $region21: #{tpu_custom_call.1} parent=1 // pred_fallthru
      _
    // Predicated region
    $region22: #{tpu_custom_call.1} parent=1 // pred_check
      _
    $region23: #{tpu_custom_call.1} parent=1 // pred_check_branch
      %67 = sbr.rel (0) target = $region25
    $region24: #{tpu_custom_call.1} parent=1 // pred_region
      _
    $region25: #{tpu_custom_call.1} parent=1 // pred_fallthru
      _
    %68 = vsyncpa [#allocation5], 1

</llo_original>
